<compile_context>
chip_gen: v5e
topology: v5e:2x2
jax: 0.10.0
libtpu: 0.0.40
codegen_flags: <defaults>
</compile_context>

<pallas_src>
import functools
import math

import jax
import jax.numpy as jnp
from jax import lax
from jax.experimental import pallas as pl
from jax.experimental.pallas import tpu as pltpu


_MASK_VALUE = -1e30  # finite "-inf" so masked flash bookkeeping never produces NaNs


def _round_up(v, m):
    return ((v + m - 1) // m) * m


def _vmem_capacity_bytes():
    try:
        cap = getattr(pltpu.get_tpu_info(), "vmem_capacity_bytes", None)
        if cap:
            return int(cap)
    except Exception:
        pass
    return 64 * 1024 * 1024  # conservative default (v7x per-TensorCore VMEM)


def _choose_tiles(hw, n, vmem_bytes):
    """Pick (tq, tk) so that one divides the other (keeps HW padding small)."""
    big = vmem_bytes >= 100 * 1024 * 1024          # v5e/v6e (128 MiB) vs v7x (64 MiB)
    tq_cap = 1024 if big else 512
    tk_cap = 512 if big else 256
    if hw <= tk_cap:
        tk = tq = _round_up(hw, 8)
    else:
        tk = tk_cap
        tq = min(tq_cap, _round_up(hw, tk))        # tk | tq in both branches
    # v7x has 2 TensorCores: make sure there are >= 2 "parallel" grid units.
    if n == 1 and tq >= hw and hw > 8:
        tq = max(8, _round_up(-(-hw // 2), 8))
        if tk % tq != 0 and tq % tk != 0:
            tk = tq
    return tq, tk


def _proj_kernel(x_ref, w_ref, b_ref, theta_ref, phig_ref, *, ci_pad):
    # Fused theta/phi/g projection: one lane-dense matmul per token tile.
    x = x_ref[...].astype(w_ref.dtype)
    p = (jnp.dot(x, w_ref[...], preferred_element_type=jnp.float32)
         + b_ref[...].astype(jnp.float32))
    theta_ref[...] = p[:, :ci_pad].astype(theta_ref.dtype)
    phig_ref[...] = p[:, ci_pad:].astype(phig_ref.dtype)


def _attn_kernel(xq_ref, theta_ref, phig_ref, wo_ref, bo_ref, o_ref, acc_sc, *ml,
                 ci_pad, hw, tk, mode, need_mask):
    k_idx = pl.program_id(2)
    mxu_dtype = theta_ref.dtype   # bf16 iff the wrapper stored bf16 projections/weights

    if mode == "embedded_gaussian":
        m_sc, l_sc = ml

    @pl.when(k_idx == 0)
    def _init():
        acc_sc[...] = jnp.zeros(acc_sc.shape, acc_sc.dtype)
        if mode == "embedded_gaussian":
            m_sc[...] = jnp.full(m_sc.shape, _MASK_VALUE, m_sc.dtype)
            l_sc[...] = jnp.zeros(l_sc.shape, l_sc.dtype)

    phig = phig_ref[...]
    phi = phig[:, :ci_pad]
    g = phig[:, ci_pad:]

    # logits = theta @ phi^T as an NT contraction (no materialized transpose),
    # done in the compute dtype so bf16 inputs hit the fast MXU path.
    logits = lax.dot_general(
        theta_ref[...], phi,
        dimension_numbers=(((1,), (1,)), ((), ())),
        preferred_element_type=jnp.float32)

    if need_mask:
        col = lax.broadcasted_iota(jnp.int32, (1, logits.shape[1]), 1) + k_idx * tk
        kmask = col < hw          # valid (non-padded) key positions, shape (1, tk)

    if mode == "embedded_gaussian":
        if need_mask:
            logits = jnp.where(kmask, logits, _MASK_VALUE)
        m_prev = m_sc[...]
        m_new = jnp.maximum(m_prev, jnp.max(logits, axis=-1, keepdims=True))
        alpha = jnp.exp(m_prev - m_new)
        # TODO(synk): a bf16 exp would halve EUP occupancy on v6e/v7x; kept f32 for
        # tolerance (and v5e has no bf16 EUP).
        p = jnp.exp(logits - m_new)
        if need_mask:
            p = jnp.where(kmask, p, 0.0)
        l_sc[...] = alpha * l_sc[...] + jnp.sum(p, axis=-1, keepdims=True)
        acc_sc[...] = alpha * acc_sc[...] + jnp.dot(
            p.astype(mxu_dtype), g, preferred_element_type=jnp.float32)
        m_sc[...] = m_new
    else:  # dot_product: the 1/HW normalization is folded into w_g / b_g.
        if need_mask:
            logits = jnp.where(kmask, logits, 0.0)
        # Unnormalized logits can be large; keep this matmul in f32 to avoid the
        # bf16 precision cliff flagged in review (theta@phi^T above stays bf16).
        acc_sc[...] = acc_sc[...] + jnp.dot(
            logits, g.astype(jnp.float32), preferred_element_type=jnp.float32)

    @pl.when(k_idx == pl.num_programs(2) - 1)
    def _finalize():
        if mode == "embedded_gaussian":
            # TODO(synk): pl.reciprocal(approx=True) uses the free EUP slot; kept
            # exact for tight validation tolerances.
            y = acc_sc[...] * pl.reciprocal(l_sc[...], approx=False)
        else:
            y = acc_sc[...]
        out = (xq_ref[...].astype(jnp.float32)
               + jnp.dot(y.astype(mxu_dtype), wo_ref[...],
                         preferred_element_type=jnp.float32)
               + bo_ref[...].astype(jnp.float32))
        o_ref[...] = out.astype(o_ref.dtype)


def nonlocal_forward(x_nchw, params, *, mode="embedded_gaussian", use_scale=True,
                     compute_dtype=None):
    """x_nchw: (N, C, H, W). params: dict of weights stored as (in, out) for x @ W."""
    if mode not in ("embedded_gaussian", "dot_product"):
        raise ValueError(f"unsupported mode: {mode}")

    n, c, h, w = x_nchw.shape
    hw = h * w
    ci = params["w_theta"].shape[1]
    cdt = jnp.dtype(compute_dtype) if compute_dtype is not None else x_nchw.dtype

    # Fold scalar constants into the (tiny) projection weights instead of scaling
    # the O(HW^2) logits in-kernel.
    w_theta, b_theta = params["w_theta"], params["b_theta"]
    w_g, b_g = params["w_g"], params["b_g"]
    if mode == "embedded_gaussian" and use_scale:
        s = 1.0 / math.sqrt(ci)
        w_theta, b_theta = w_theta * s, b_theta * s
    if mode == "dot_product":
        s = 1.0 / hw
        w_g, b_g = w_g * s, b_g * s

    # Lane-dense channel padding (no-op when already multiples of 128).
    c_pad = _round_up(max(c, 128), 128)
    ci_pad = _round_up(max(ci, 128), 128)

    def pad2d(a, rows, cols):
        return jnp.pad(a, ((0, rows - a.shape[0]), (0, cols - a.shape[1])))

    # Weights/biases stored in the compute dtype so bf16 inputs keep the bf16 MXU
    # path for the projections and halve resident weight VMEM / DMA.
    w_all = jnp.concatenate(
        [pad2d(w_theta, c_pad, ci_pad),
         pad2d(params["w_phi"], c_pad, ci_pad),
         pad2d(w_g, c_pad, ci_pad)], axis=1).astype(cdt)
    b_all = jnp.concatenate(
        [pad2d(b_theta, 1, ci_pad),
         pad2d(params["b_phi"], 1, ci_pad),
         pad2d(b_g, 1, ci_pad)], axis=1).astype(cdt)
    w_out_p = pad2d(params["w_out"], ci_pad, c_pad).astype(cdt)
    b_out_p = pad2d(params["b_out"], 1, c_pad).astype(cdt)

    # Spatial tiling sized for the detected VMEM capacity; HW is padded to the
    # tile size and padded keys are masked in-kernel (no full-extent fallback).
    vmem_bytes = _vmem_capacity_bytes()
    tq, tk = _choose_tiles(hw, n, vmem_bytes)
    hw_pad = _round_up(hw, max(tq, tk))
    vmem_limit = (96 if vmem_bytes >= 100 * 1024 * 1024 else 48) * 1024 * 1024

    # NCHW -> (N, HW_pad, C_pad) lane-dense tokens.
    x_tok = jnp.transpose(x_nchw.reshape(n, c, hw), (0, 2, 1))
    x_tok = jnp.pad(x_tok, ((0, 0), (0, hw_pad - hw), (0, c_pad - c)))

    # ---- Pass 1: fused theta / [phi|g] projection, computed once per token. ----
    # TODO(synk): when C < 2*Ci the old fused in-kernel key projection reads fewer
    # HBM bytes; a per-shape choice between the two paths is left for later.
    tp = min(tq, tk)
    theta, phi_g = pl.pallas_call(
        functools.partial(_proj_kernel, ci_pad=ci_pad),
        out_shape=(jax.ShapeDtypeStruct((n, hw_pad, ci_pad), cdt),
                   jax.ShapeDtypeStruct((n, hw_pad, 2 * ci_pad), cdt)),
        grid_spec=pltpu.PrefetchScalarGridSpec(
            num_scalar_prefetch=0,
            grid=(n, hw_pad // tp),
            in_specs=[
                pl.BlockSpec((None, tp, c_pad), lambda b, i: (b, i, 0)),     # x tokens
                pl.BlockSpec((c_pad, 3 * ci_pad), lambda b, i: (0, 0)),      # [w_theta|w_phi|w_g]
                pl.BlockSpec((1, 3 * ci_pad), lambda b, i: (0, 0)),          # fused bias
            ],
            out_specs=[
                pl.BlockSpec((None, tp, ci_pad), lambda b, i: (b, i, 0)),        # theta
                pl.BlockSpec((None, tp, 2 * ci_pad), lambda b, i: (b, i, 0)),    # [phi|g]
            ],
        ),
        compiler_params=pltpu.CompilerParams(
            dimension_semantics=("parallel", "parallel"),
            vmem_limit_bytes=vmem_limit,
        ),
    )(x_tok, w_all, b_all)

    # ---- Pass 2: flash-style attention + conv_out + residual. ----
    need_mask = hw_pad != hw
    kernel = functools.partial(_attn_kernel, ci_pad=ci_pad, hw=hw, tk=tk,
                               mode=mode, need_mask=need_mask)
    scratch = [pltpu.VMEM((tq, ci_pad), jnp.float32)]               # numerator acc
    if mode == "embedded_gaussian":
        scratch += [pltpu.VMEM((tq, 1), jnp.float32),               # running max
                    pltpu.VMEM((tq, 1), jnp.float32)]               # running denom

    out_tok = pl.pallas_call(
        kernel,
        out_shape=jax.ShapeDtypeStruct((n, hw_pad, c_pad), x_nchw.dtype),
        grid_spec=pltpu.PrefetchScalarGridSpec(
            num_scalar_prefetch=0,
            grid=(n, hw_pad // tq, hw_pad // tk),
            in_specs=[
                pl.BlockSpec((None, tq, c_pad), lambda b, qi, ki: (b, qi, 0)),       # x (residual)
                pl.BlockSpec((None, tq, ci_pad), lambda b, qi, ki: (b, qi, 0)),      # theta (q rows)
                pl.BlockSpec((None, tk, 2 * ci_pad), lambda b, qi, ki: (b, ki, 0)),  # [phi|g] (k rows)
                pl.BlockSpec((ci_pad, c_pad), lambda b, qi, ki: (0, 0)),             # w_out
                pl.BlockSpec((1, c_pad), lambda b, qi, ki: (0, 0)),                  # b_out
            ],
            out_specs=pl.BlockSpec((None, tq, c_pad), lambda b, qi, ki: (b, qi, 0)),
            scratch_shapes=scratch,
        ),
        compiler_params=pltpu.CompilerParams(
            dimension_semantics=("parallel", "parallel", "arbitrary"),
            vmem_limit_bytes=vmem_limit,
        ),
    )(x_tok, theta, phi_g, w_out_p, b_out_p)

    # (N, HW_pad, C_pad) -> NCHW, dropping spatial and channel padding.
    return jnp.transpose(out_tok[:, :hw, :c], (0, 2, 1)).reshape(n, c, h, w)


def nonlocal_reference(x_nchw, params, *, mode="embedded_gaussian", use_scale=True):
    """Plain-JAX reference mirroring the PyTorch forward."""
    n, c, h, w = x_nchw.shape
    hw = h * w
    ci = params["w_theta"].shape[1]
    x_tok = jnp.transpose(x_nchw.reshape(n, c, hw), (0, 2, 1)).astype(jnp.float32)

    theta = x_tok @ params["w_theta"] + params["b_theta"]          # (N, HW, Ci)
    phi = x_tok @ params["w_phi"] + params["b_phi"]                # (N, HW, Ci)
    g = x_tok @ params["w_g"] + params["b_g"]                      # (N, HW, Ci)

    logits = jnp.einsum("nqc,nkc->nqk", theta, phi)
    if mode == "embedded_gaussian":
        if use_scale:
            logits = logits / math.sqrt(ci)
        pairwise = jax.nn.softmax(logits, axis=-1)
    else:
        pairwise = logits / logits.shape[-1]

    y = jnp.einsum("nqk,nkc->nqc", pairwise, g)
    out_tok = x_tok + y @ params["w_out"] + params["b_out"]
    return jnp.transpose(out_tok, (0, 2, 1)).reshape(n, c, h, w).astype(x_nchw.dtype)


def init_params(key, in_channels, reduction=2, std=0.01, zeros_init=False):
    """Deterministic init mirroring _NonLocalNd.init_weights.

    PyTorch 1x1 conv weight has shape (out, in, 1, 1); here we store the
    transposed matmul form (in, out) so the kernel computes x @ W + b.
    zeros_init=False (a supported init path) is used so the full data path is
    exercised with non-trivial values.
    """
    ci = in_channels // reduction
    keys = jax.random.split(key, 4)
    normal = lambda k, shape: std * jax.random.normal(k, shape, dtype=jnp.float32)
    return {
        "w_theta": normal(keys[0], (in_channels, ci)),
        "b_theta": jnp.zeros((1, ci), jnp.float32),
        "w_phi": normal(keys[1], (in_channels, ci)),
        "b_phi": jnp.zeros((1, ci), jnp.float32),
        "w_g": normal(keys[2], (in_channels, ci)),
        "b_g": jnp.zeros((1, ci), jnp.float32),
        "w_out": (jnp.zeros((ci, in_channels), jnp.float32) if zeros_init
                  else normal(keys[3], (ci, in_channels))),
        "b_out": jnp.zeros((1, in_channels), jnp.float32),
    }


if __name__ == "__main__":
    key = jax.random.PRNGKey(0)
    k_x, k_p, k_x2 = jax.random.split(key, 3)

    # Config 1: HW=1024 -> multiple q/k tiles, exercises the online-softmax
    # accumulation path with no spatial padding.
    N, C, H, W = 2, 8, 32, 32
    x = jax.random.normal(k_x, (N, C, H, W), dtype=jnp.float32)
    params = init_params(k_p, in_channels=C, reduction=2, zeros_init=False)

    # Config 2: N=1, HW=324 (non-divisible) -> exercises the padded-key masking
    # and the >=2-q-blocks split for v7x's second TensorCore.
    x2 = jax.random.normal(k_x2, (1, C, 18, 18), dtype=jnp.float32)

    for mode in ("embedded_gaussian", "dot_product"):
        for xi in (x, x2):
            out = nonlocal_forward(xi, params, mode=mode, use_scale=True)
            out = jax.block_until_ready(out)
            ref = nonlocal_reference(xi, params, mode=mode, use_scale=True)
            assert out.shape == xi.shape and out.dtype == xi.dtype
            assert jnp.allclose(out, ref, atol=1e-5, rtol=1e-5), \
                f"mismatch vs reference ({mode}, shape={xi.shape})"

    print("KERNEL_OK")
</pallas_src>

<mosaic_0001>
module attributes {stable_mosaic.version = 11 : i64} {
  func.func @_proj_kernel(%arg0: i32, %arg1: i32, %arg2: memref<1x256x128xf32, #tpu.memory_space<vmem>>, %arg3: memref<128x384xf32, #tpu.memory_space<vmem>>, %arg4: memref<1x384xf32, #tpu.memory_space<vmem>>, %arg5: memref<1x256x128xf32, #tpu.memory_space<vmem>>, %arg6: memref<1x256x256xf32, #tpu.memory_space<vmem>>) attributes {dimension_semantics = [#tpu.dimension_semantics<parallel>, #tpu.dimension_semantics<parallel>], iteration_bounds = array<i64: 2, 4>, scalar_prefetch = 0 : i64, scratch_operands = 0 : i64, tpu.core_type = #tpu.core_type<tc>, window_params = [{transform_indices = @transform_0, window_bounds = array<i64: 1, 256, 128>}, {pipeline_mode = #tpu.pipeline_mode<synchronous>, transform_indices = @transform_1, window_bounds = array<i64: 128, 384>}, {pipeline_mode = #tpu.pipeline_mode<synchronous>, transform_indices = @transform_2, window_bounds = array<i64: 1, 384>}, {transform_indices = @transform_3, window_bounds = array<i64: 1, 256, 128>}, {transform_indices = @transform_4, window_bounds = array<i64: 1, 256, 256>}]} {
    %c0 = arith.constant 0 : index
    %c0_0 = arith.constant 0 : index
    %c0_1 = arith.constant 0 : index
    %0 = vector.load %arg2[%c0, %c0_0, %c0_1] : memref<1x256x128xf32, #tpu.memory_space<vmem>>, vector<1x256x128xf32>
    %1 = vector.shape_cast %0 : vector<1x256x128xf32> to vector<256x128xf32>
    %c0_2 = arith.constant 0 : index
    %c0_3 = arith.constant 0 : index
    %2 = vector.load %arg3[%c0_2, %c0_3] : memref<128x384xf32, #tpu.memory_space<vmem>>, vector<128x384xf32>
    %cst = arith.constant dense<0.000000e+00> : vector<256x384xf32>
    %3 = tpu.matmul %1, %2, %cst {dimension_numbers = #tpu.dot_dimension_numbers<[1], [0], [0], [1], [0, 0, 1, 1], [], []>} : vector<256x128xf32>, vector<128x384xf32>, vector<256x384xf32> -> vector<256x384xf32>
    %c0_4 = arith.constant 0 : index
    %c0_5 = arith.constant 0 : index
    %4 = vector.load %arg4[%c0_4, %c0_5] : memref<1x384xf32, #tpu.memory_space<vmem>>, vector<1x384xf32>
    %5 = vector.broadcast %4 : vector<1x384xf32> to vector<256x384xf32>
    %6 = arith.addf %3, %5 : vector<256x384xf32>
    %7 = vector.extract_strided_slice %6 {offsets = [0, 0], sizes = [256, 128], strides = [1, 1]} : vector<256x384xf32> to vector<256x128xf32>
    %c0_6 = arith.constant 0 : index
    %c0_7 = arith.constant 0 : index
    %c0_8 = arith.constant 0 : index
    %8 = vector.load %arg5[%c0_6, %c0_7, %c0_8] : memref<1x256x128xf32, #tpu.memory_space<vmem>>, vector<1x256x128xf32>
    %9 = vector.shape_cast %8 : vector<1x256x128xf32> to vector<256x128xf32>
    %10 = vector.shape_cast %7 : vector<256x128xf32> to vector<1x256x128xf32>
    tpu.vector_store %arg5[%c0_6, %c0_7, %c0_8], %10 {strides = array<i32>} : memref<1x256x128xf32, #tpu.memory_space<vmem>>, vector<1x256x128xf32>,
    %11 = vector.extract_strided_slice %6 {offsets = [0, 128], sizes = [256, 256], strides = [1, 1]} : vector<256x384xf32> to vector<256x256xf32>
    %c0_9 = arith.constant 0 : index
    %c0_10 = arith.constant 0 : index
    %c0_11 = arith.constant 0 : index
    %12 = vector.load %arg6[%c0_9, %c0_10, %c0_11] : memref<1x256x256xf32, #tpu.memory_space<vmem>>, vector<1x256x256xf32>
    %13 = vector.shape_cast %12 : vector<1x256x256xf32> to vector<256x256xf32>
    %14 = vector.shape_cast %11 : vector<256x256xf32> to vector<1x256x256xf32>
    tpu.vector_store %arg6[%c0_9, %c0_10, %c0_11], %14 {strides = array<i32>} : memref<1x256x256xf32, #tpu.memory_space<vmem>>, vector<1x256x256xf32>,
    return
  }
  func.func @transform_0(%arg0: i32, %arg1: i32) -> (i32, i32, i32) {
    %c0_i32 = arith.constant 0 : i32
    %c0_i32_0 = arith.constant 0 : i32
    return %arg0, %arg1, %c0_i32 : i32, i32, i32
  }
  func.func @transform_1(%arg0: i32, %arg1: i32) -> (i32, i32) {
    %c0_i32 = arith.constant 0 : i32
    %c0_i32_0 = arith.constant 0 : i32
    %c0_i32_1 = arith.constant 0 : i32
    return %c0_i32, %c0_i32_0 : i32, i32
  }
  func.func @transform_2(%arg0: i32, %arg1: i32) -> (i32, i32) {
    %c0_i32 = arith.constant 0 : i32
    %c0_i32_0 = arith.constant 0 : i32
    %c0_i32_1 = arith.constant 0 : i32
    return %c0_i32, %c0_i32_0 : i32, i32
  }
  func.func @transform_3(%arg0: i32, %arg1: i32) -> (i32, i32, i32) {
    %c0_i32 = arith.constant 0 : i32
    %c0_i32_0 = arith.constant 0 : i32
    return %arg0, %arg1, %c0_i32 : i32, i32, i32
  }
  func.func @transform_4(%arg0: i32, %arg1: i32) -> (i32, i32, i32) {
    %c0_i32 = arith.constant 0 : i32
    %c0_i32_0 = arith.constant 0 : i32
    return %arg0, %arg1, %c0_i32 : i32, i32, i32
  }
}

</mosaic_0001>

<llo_original>
// kernel: tpu_custom_call.1
$region0: #{tpu_custom_call.1}
  #allocation0 [shape = 'u32[]', space=smem, size = 0x4, offset = 0x4, fixed_abs, tag = 'smem constant byte address 0x4 - core index']
  #allocation1 [shape = 'u32[72,128]{1,0:T(1,128)}', space=vmem, size = 0x9000, scoped, tag = 'internal scratch']
  %s0 = inlined_call_operand.hbm [shape: f32[2,1024,128], index: 0, kind: input, shape index: {}]
  %s1 = inlined_call_operand.hbm [shape: f32[128,384], index: 1, kind: input, shape index: {}]
  %s2 = inlined_call_operand.hbm [shape: f32[1,384], index: 2, kind: input, shape index: {}]
  %s3 = inlined_call_operand.hbm [shape: f32[2,1024,128], index: 3, kind: output, shape index: {0}]
  %s4 = inlined_call_operand.hbm [shape: f32[2,1024,256], index: 4, kind: output, shape index: {1}]
  %5 = xla_tuple %s3, %s4
  %s6 = sld [smem:[#allocation0]]
  $region65: #{tpu_custom_call.1} parent=0
    _
  %s8 = ssub.s32 1, %s6
  %s9 = scalar_select 0, %s8, %s6
  $region1: #{tpu_custom_call.1} parent=0
    #allocation2 [shape = 'u8[262144]{0}', space=vmem, size = 0x40000, scoped, tag = 'input window, operand 0']
    #allocation3 [shape = 's32[2]{0}', space=sflag, size = 0x8, scoped, tag = 'scoped memory for tpu_custom_call.1']
    #allocation4 [shape = 's32[2]{0}', space=sflag, size = 0x8, scoped, tag = 'scoped memory for tpu_custom_call.1']
    #allocation5 [shape = 'u8[196608]{0}', space=vmem, size = 0x30000, scoped, tag = 'input window, operand 1, single buffered']
    #allocation6 [shape = 's32[1]{0}', space=sflag, size = 0x4, scoped, tag = 'scoped memory for tpu_custom_call.1']
    #allocation7 [shape = 'u8[1536]{0}', space=vmem, size = 0x800, scoped, tag = 'input window, operand 2, single buffered']
    #allocation8 [shape = 'u8[262144]{0}', space=vmem, size = 0x40000, scoped, tag = 'output window, operand 0']
    #allocation9 [shape = 'u8[524288]{0}', space=vmem, size = 0x80000, scoped, tag = 'output window, operand 1']
    #allocation10 [shape = 's32[2]{0}', space=sflag, size = 0x8, scoped, tag = 'scoped memory for tpu_custom_call.1']
    %10 = vsyncpa [#allocation3], 0
    %s11 = scalar_lea.sflag [#allocation3], 1
    %12 = vsyncpa %s11, 0
    %13 = vsyncpa [#allocation6], 0
    %14 = vsyncpa [#allocation4], 0
    %s15 = scalar_lea.sflag [#allocation4], 1
    %16 = vsyncpa %s15, 0
    %17 = vsyncpa [#allocation10], 0
    %s18 = scalar_lea.sflag [#allocation10], 1
    %19 = vsyncpa %s18, 0
    loop: start=0, step=1, limit=10
    $region2: #{tpu_custom_call.1} parent=1 // loop_pre_header
      _
    $region3: #{tpu_custom_call.1} parent=1 // loop_header
      %s21 = sphi 0, %s25
      %p22 = scmp.ge.s32.totalorder %s21, 10
      %s28 = sphi 0, %s40
      %s29 = sphi 0, %s36
      %s30 = sphi 0, %s28
      %s31 = sphi 0, %s29
      %s32 = sphi 0, %s30
      %s33 = sphi 0, %s31
      %s45 = sphi 0, %s47
      %s48 = sphi 0, %s45
      %s49 = sphi 0, %s48
      %s65 = sphi 0, %s49
      %s69 = sphi 0, %s69
      %s71 = sphi 0, %s69
      %s72 = sphi 0, %s71
      %s86 = sphi 0, %s72
      %s90 = sphi 0, %s90
      %s92 = sphi 0, %s90
      %s93 = sphi 0, %s92
      %s107 = sphi 0, %s93
      %s115 = sphi 0, %s117
      %s118 = sphi 0, %s115
      %s119 = sphi 0, %s118
      %s135 = sphi 0, %s119
      %s143 = sphi 0, %s145
      %s146 = sphi 0, %s143
      %s147 = sphi 0, %s146
      %s163 = sphi 0, %s147
    $region4: #{tpu_custom_call.1} parent=1 // loop_header_branch
      %24 = sbr.rel (%p22) target = $region8
    $region5: #{tpu_custom_call.1} parent=1 // loop_body
      %s26 = ssub.s32 %s21, 1
      %s27 = ssub.s32 %s21, 2
      %s34 = sadd.s32 1, %s29
      %p35 = scmp.ge.s32.totalorder %s34, 4
      %s36 = scalar_select %p35, 0, %s34
      %s37 = sadd.s32 1, %s28
      %s38 = scalar_select %p35, %s37, %s28
      %p39 = scmp.ge.s32.totalorder %s38, 2
      %s40 = scalar_select %p39, 0, %s38
      %s41 = ssub.s32 %s28, %s40
      %s42 = ssub.s32 %s29, %s36
      %s43 = sor.u32 %s41, %s42
      %p44 = scmp.eq.s32.totalorder %s43, 0
      %s46 = sadd.s32 %s45, 1
      %s47 = scalar_select %p44, %s45, %s46
      %p50 = pneg %p44
      %p51 = scmp.eq.s32.totalorder %s21, 7
      %p52 = por %p50, %p51
      %p53 = scmp.ne.s32.totalorder %s45, %s48
      %p54 = scmp.eq.s32.totalorder %s21, 0
      %p55 = por %p53, %p54
      %p56 = scmp.ne.s32.totalorder %s45, %s48
      %p57 = scmp.eq.s32.totalorder %s26, 7
      %p58 = por %p56, %p57
      %p59 = scmp.ne.s32.totalorder %s48, %s49
      %p60 = scmp.eq.s32.totalorder %s26, 0
      %p61 = por %p59, %p60
      %p62 = scmp.ne.s32.totalorder %s48, %s49
      %p63 = scmp.eq.s32.totalorder %s27, 7
      %p64 = por %p62, %p63
      %p66 = scmp.ne.s32.totalorder %s49, %s65
      %p67 = scmp.eq.s32.totalorder %s27, 0
      %p68 = por %p66, %p67
      %s70 = sadd.s32 %s69, 1
      %p73 = scmp.eq.s32.totalorder %s21, 7
      %p74 = scmp.ne.s32.totalorder %s69, %s71
      %p75 = scmp.eq.s32.totalorder %s21, 0
      %p76 = por %p74, %p75
      %p77 = scmp.ne.s32.totalorder %s69, %s71
      %p78 = scmp.eq.s32.totalorder %s26, 7
      %p79 = por %p77, %p78
      %p80 = scmp.ne.s32.totalorder %s71, %s72
      %p81 = scmp.eq.s32.totalorder %s26, 0
      %p82 = por %p80, %p81
      %p83 = scmp.ne.s32.totalorder %s71, %s72
      %p84 = scmp.eq.s32.totalorder %s27, 7
      %p85 = por %p83, %p84
      %p87 = scmp.ne.s32.totalorder %s72, %s86
      %p88 = scmp.eq.s32.totalorder %s27, 0
      %p89 = por %p87, %p88
      %s91 = sadd.s32 %s90, 1
      %p94 = scmp.eq.s32.totalorder %s21, 7
      %p95 = scmp.ne.s32.totalorder %s90, %s92
      %p96 = scmp.eq.s32.totalorder %s21, 0
      %p97 = por %p95, %p96
      %p98 = scmp.ne.s32.totalorder %s90, %s92
      %p99 = scmp.eq.s32.totalorder %s26, 7
      %p100 = por %p98, %p99
      %p101 = scmp.ne.s32.totalorder %s92, %s93
      %p102 = scmp.eq.s32.totalorder %s26, 0
      %p103 = por %p101, %p102
      %p104 = scmp.ne.s32.totalorder %s92, %s93
      %p105 = scmp.eq.s32.totalorder %s27, 7
      %p106 = por %p104, %p105
      %p108 = scmp.ne.s32.totalorder %s93, %s107
      %p109 = scmp.eq.s32.totalorder %s27, 0
      %p110 = por %p108, %p109
      %s111 = ssub.s32 %s28, %s40
      %s112 = ssub.s32 %s29, %s36
      %s113 = sor.u32 %s111, %s112
      %p114 = scmp.eq.s32.totalorder %s113, 0
      %s116 = sadd.s32 %s115, 1
      %s117 = scalar_select %p114, %s115, %s116
      %p120 = pneg %p114
      %p121 = scmp.eq.s32.totalorder %s21, 7
      %p122 = por %p120, %p121
      %p123 = scmp.ne.s32.totalorder %s115, %s118
      %p124 = scmp.eq.s32.totalorder %s21, 0
      %p125 = por %p123, %p124
      %p126 = scmp.ne.s32.totalorder %s115, %s118
      %p127 = scmp.eq.s32.totalorder %s26, 7
      %p128 = por %p126, %p127
      %p129 = scmp.ne.s32.totalorder %s118, %s119
      %p130 = scmp.eq.s32.totalorder %s26, 0
      %p131 = por %p129, %p130
      %p132 = scmp.ne.s32.totalorder %s118, %s119
      %p133 = scmp.eq.s32.totalorder %s27, 7
      %p134 = por %p132, %p133
      %p136 = scmp.ne.s32.totalorder %s119, %s135
      %p137 = scmp.eq.s32.totalorder %s27, 0
      %p138 = por %p136, %p137
      %s139 = ssub.s32 %s28, %s40
      %s140 = ssub.s32 %s29, %s36
      %s141 = sor.u32 %s139, %s140
      %p142 = scmp.eq.s32.totalorder %s141, 0
      %s144 = sadd.s32 %s143, 1
      %s145 = scalar_select %p142, %s143, %s144
      %p148 = pneg %p142
      %p149 = scmp.eq.s32.totalorder %s21, 7
      %p150 = por %p148, %p149
      %p151 = scmp.ne.s32.totalorder %s143, %s146
      %p152 = scmp.eq.s32.totalorder %s21, 0
      %p153 = por %p151, %p152
      %p154 = scmp.ne.s32.totalorder %s143, %s146
      %p155 = scmp.eq.s32.totalorder %s26, 7
      %p156 = por %p154, %p155
      %p157 = scmp.ne.s32.totalorder %s146, %s147
      %p158 = scmp.eq.s32.totalorder %s26, 0
      %p159 = por %p157, %p158
      %p160 = scmp.ne.s32.totalorder %s146, %s147
      %p161 = scmp.eq.s32.totalorder %s27, 7
      %p162 = por %p160, %p161
      %p164 = scmp.ne.s32.totalorder %s147, %s163
      %p165 = scmp.eq.s32.totalorder %s27, 0
      %p166 = por %p164, %p165
      %p167 = scmp.le.s32.totalorder 1, %s21
      %p168 = scmp.lt.s32.totalorder %s21, 9
      %p169 = pnand %p167, %p168
      %p170 = pneg %p169
      // Predicated region
      $region9: #{tpu_custom_call.1} parent=5 // pred_check
        _
      $region10: #{tpu_custom_call.1} parent=5 // pred_check_branch
        %172 = sbr.rel (%p169) target = $region12
      $region11: #{tpu_custom_call.1} parent=5 // pred_region
        %s173 = ssub.s32 %s21, 1
        // Predicated region
        $region13: #{tpu_custom_call.1} parent=11 // pred_check
          %p174 = pneg %p82
        $region14: #{tpu_custom_call.1} parent=11 // pred_check_branch
          %176 = sbr.rel (%p174) target = $region16
        $region15: #{tpu_custom_call.1} parent=11 // pred_region
          %178 = vsyncadd [#allocation6], 0
          %s179 = sshll.u32 %s1, 4
          %s180 = int_to_ptr.hbm [resolvable:$true] %s179
          %s181 = sshll.u32 [#allocation5], 4
          %s182 = int_to_ptr.vmem [resolvable:$true] %s181
          %187 = dma.hbm_to_vmem [thread:$0]  %s180, 6144, %s182, [#allocation6], 384, 384, 24
        $region16: #{tpu_custom_call.1} parent=11 // pred_fallthru
          _
        // Predicated region
        $region17: #{tpu_custom_call.1} parent=11 // pred_check
          %p188 = pneg %p103
        $region18: #{tpu_custom_call.1} parent=11 // pred_check_branch
          %190 = sbr.rel (%p188) target = $region20
        $region19: #{tpu_custom_call.1} parent=11 // pred_region
          %192 = vsyncadd [#allocation6], 0
          %s194 = sshll.u32 %s2, 4
          %s195 = int_to_ptr.hbm [resolvable:$true] %s194
          %s196 = sshll.u32 [#allocation7], 4
          %s197 = int_to_ptr.vmem [resolvable:$true] %s196
          %199 = dma.hbm_to_vmem [thread:$0]  %s195, 48, %s197, [#allocation6]
        $region20: #{tpu_custom_call.1} parent=11 // pred_fallthru
          _
      $region12: #{tpu_custom_call.1} parent=5 // pred_fallthru
        _
      %p200 = scmp.lt.s32.totalorder %s21, 8
      // Predicated region
      $region21: #{tpu_custom_call.1} parent=5 // pred_check
        %p201 = pneg %p200
      $region22: #{tpu_custom_call.1} parent=5 // pred_check_branch
        %203 = sbr.rel (%p201) target = $region24
      $region23: #{tpu_custom_call.1} parent=5 // pred_region
        // Predicated region
        $region25: #{tpu_custom_call.1} parent=23 // pred_check
          %p204 = pneg %p55
        $region26: #{tpu_custom_call.1} parent=23 // pred_check_branch
          %206 = sbr.rel (%p204) target = $region28
        $region27: #{tpu_custom_call.1} parent=23 // pred_region
          %s207 = sand.u32 %s45, 1
          %s208 = scalar_lea.sflag [#allocation3], %s207
          %s209 = sand.u32 %s45, 1
          %s210 = smul.addr %s209, 256
          %s211 = scalar_lea.vmem [#allocation2], %s210
          %s212 = smul.u32 32, %s29
          %214 = vsyncadd %s208, 0
          %s215 = smul.addr %s28, 128
          %s216 = sadd.s32 %s212, %s215
          %s217 = smul.addr %s216, 8
          %s218 = scalar_lea.hbm %s0, %s217
          %s219 = sshll.u32 %s218, 4
          %s220 = int_to_ptr.hbm [resolvable:$true] %s219
          %s221 = sshll.u32 %s211, 4
          %s222 = int_to_ptr.vmem [resolvable:$true] %s221
          %227 = dma.hbm_to_vmem [thread:$0]  %s220, 4096, %s222, %s208, 128, 128, 8
        $region28: #{tpu_custom_call.1} parent=23 // pred_fallthru
          _
      $region24: #{tpu_custom_call.1} parent=5 // pred_fallthru
        _
      %p228 = scmp.le.s32.totalorder 1, %s21
      %p229 = scmp.lt.s32.totalorder %s21, 9
      %p230 = pnand %p228, %p229
      %p231 = pneg %p230
      // Predicated region
      $region29: #{tpu_custom_call.1} parent=5 // pred_check
        _
      $region30: #{tpu_custom_call.1} parent=5 // pred_check_branch
        %233 = sbr.rel (%p230) target = $region32
      $region31: #{tpu_custom_call.1} parent=5 // pred_region
        %s234 = ssub.s32 %s21, 1
        %s235 = sand.u32 %s48, 1
        %s236 = scalar_lea.sflag [#allocation3], %s235
        %s237 = sand.u32 %s48, 1
        %s238 = smul.addr %s237, 256
        %s239 = scalar_lea.vmem [#allocation2], %s238
        // Predicated region
        $region33: #{tpu_custom_call.1} parent=31 // pred_check
          %p240 = pneg %p61
        $region34: #{tpu_custom_call.1} parent=31 // pred_check_branch
          %242 = sbr.rel (%p240) target = $region36
        $region35: #{tpu_custom_call.1} parent=31 // pred_region
          %244 = dma.done %s236, 4096
        $region36: #{tpu_custom_call.1} parent=31 // pred_fallthru
          _
        // Predicated region
        $region37: #{tpu_custom_call.1} parent=31 // pred_check
          %p245 = pneg %p82
        $region38: #{tpu_custom_call.1} parent=31 // pred_check_branch
          %247 = sbr.rel (%p245) target = $region40
        $region39: #{tpu_custom_call.1} parent=31 // pred_region
          %249 = dma.done [#allocation6], 6144
        $region40: #{tpu_custom_call.1} parent=31 // pred_fallthru
          _
        // Predicated region
        $region41: #{tpu_custom_call.1} parent=31 // pred_check
          %p250 = pneg %p103
        $region42: #{tpu_custom_call.1} parent=31 // pred_check_branch
          %252 = sbr.rel (%p250) target = $region44
        $region43: #{tpu_custom_call.1} parent=31 // pred_region
          %254 = dma.done [#allocation6], 48
        $region44: #{tpu_custom_call.1} parent=31 // pred_fallthru
          _
        %s255 = sand.u32 %s48, 1
        %s256 = scalar_lea.sflag [#allocation3], %s255
        %s257 = sand.u32 %s48, 1
        %s258 = smul.addr %s257, 256
        %s259 = scalar_lea.vmem [#allocation2], %s258
        %p260 = pneg %p61
        %p261 = pneg %p58
        %p262 = pneg %p82
        %p263 = pneg %p79
        %p264 = pneg %p103
        %p265 = pneg %p100
        %p266 = pneg %p131
        %p267 = pneg %p128
        %s268 = sand.u32 %s118, 1
        %s269 = scalar_lea.sflag [#allocation4], %s268
        %s270 = sand.u32 %s118, 1
        %s271 = smul.addr %s270, 256
        %s272 = scalar_lea.vmem [#allocation8], %s271
        %p273 = pneg %p159
        %p274 = pneg %p156
        %s275 = sand.u32 %s146, 1
        %s276 = scalar_lea.sflag [#allocation10], %s275
        %s277 = sand.u32 %s146, 1
        %s278 = smul.addr %s277, 512
        %s279 = scalar_lea.vmem [#allocation9], %s278
        %s280 = smul.u32 32, %s31
        %s281 = smul.u32 32, %s31
        %s282 = smul.u32 32, %s31
        %v283 = vld [vmem:[%s239] sm:$0xff]
        %v284 = vld [vmem:[%s239 + $0x8] sm:$0xff]
        %v285 = vld [vmem:[%s239 + $0x10] sm:$0xff]
        %v286 = vld [vmem:[%s239 + $0x18] sm:$0xff]
        %v287 = vld [vmem:[%s239 + $0x20] sm:$0xff]
        %v288 = vld [vmem:[%s239 + $0x28] sm:$0xff]
        %v289 = vld [vmem:[%s239 + $0x30] sm:$0xff]
        %v290 = vld [vmem:[%s239 + $0x38] sm:$0xff]
        %v291 = vld [vmem:[%s239 + $0x40] sm:$0xff]
        %v292 = vld [vmem:[%s239 + $0x48] sm:$0xff]
        %v293 = vld [vmem:[%s239 + $0x50] sm:$0xff]
        %v294 = vld [vmem:[%s239 + $0x58] sm:$0xff]
        %v295 = vld [vmem:[%s239 + $0x60] sm:$0xff]
        %v296 = vld [vmem:[%s239 + $0x68] sm:$0xff]
        %v297 = vld [vmem:[%s239 + $0x70] sm:$0xff]
        %v298 = vld [vmem:[%s239 + $0x78] sm:$0xff]
        %v299 = vld [vmem:[%s239 + $0x80] sm:$0xff]
        %v300 = vld [vmem:[%s239 + $0x88] sm:$0xff]
        %v301 = vld [vmem:[%s239 + $0x90] sm:$0xff]
        %v302 = vld [vmem:[%s239 + $0x98] sm:$0xff]
        %v303 = vld [vmem:[%s239 + $0xa0] sm:$0xff]
        %v304 = vld [vmem:[%s239 + $0xa8] sm:$0xff]
        %v305 = vld [vmem:[%s239 + $0xb0] sm:$0xff]
        %v306 = vld [vmem:[%s239 + $0xb8] sm:$0xff]
        %v307 = vld [vmem:[%s239 + $0xc0] sm:$0xff]
        %v308 = vld [vmem:[%s239 + $0xc8] sm:$0xff]
        %v309 = vld [vmem:[%s239 + $0xd0] sm:$0xff]
        %v310 = vld [vmem:[%s239 + $0xd8] sm:$0xff]
        %v311 = vld [vmem:[%s239 + $0xe0] sm:$0xff]
        %v312 = vld [vmem:[%s239 + $0xe8] sm:$0xff]
        %v313 = vld [vmem:[%s239 + $0xf0] sm:$0xff]
        %v314 = vld [vmem:[%s239 + $0xf8] sm:$0xff]
        %v315 = vld [vmem:[#allocation5] sm:$0xff]
        %v316 = vld [vmem:[#allocation5 + $0x8] sm:$0xff]
        %v317 = vld [vmem:[#allocation5 + $0x10] sm:$0xff]
        %v318 = vld [vmem:[#allocation5 + $0x18] sm:$0xff]
        %v319 = vld [vmem:[#allocation5 + $0x20] sm:$0xff]
        %v320 = vld [vmem:[#allocation5 + $0x28] sm:$0xff]
        %v321 = vld [vmem:[#allocation5 + $0x30] sm:$0xff]
        %v322 = vld [vmem:[#allocation5 + $0x38] sm:$0xff]
        %v323 = vld [vmem:[#allocation5 + $0x40] sm:$0xff]
        %v324 = vld [vmem:[#allocation5 + $0x48] sm:$0xff]
        %v325 = vld [vmem:[#allocation5 + $0x50] sm:$0xff]
        %v326 = vld [vmem:[#allocation5 + $0x58] sm:$0xff]
        %v327 = vld [vmem:[#allocation5 + $0x60] sm:$0xff]
        %v328 = vld [vmem:[#allocation5 + $0x68] sm:$0xff]
        %v329 = vld [vmem:[#allocation5 + $0x70] sm:$0xff]
        %v330 = vld [vmem:[#allocation5 + $0x78] sm:$0xff]
        %v331 = vld [vmem:[#allocation5 + $0x80] sm:$0xff]
        %v332 = vld [vmem:[#allocation5 + $0x88] sm:$0xff]
        %v333 = vld [vmem:[#allocation5 + $0x90] sm:$0xff]
        %v334 = vld [vmem:[#allocation5 + $0x98] sm:$0xff]
        %v335 = vld [vmem:[#allocation5 + $0xa0] sm:$0xff]
        %v336 = vld [vmem:[#allocation5 + $0xa8] sm:$0xff]
        %v337 = vld [vmem:[#allocation5 + $0xb0] sm:$0xff]
        %v338 = vld [vmem:[#allocation5 + $0xb8] sm:$0xff]
        %v339 = vld [vmem:[#allocation5 + $0xc0] sm:$0xff]
        %v340 = vld [vmem:[#allocation5 + $0xc8] sm:$0xff]
        %v341 = vld [vmem:[#allocation5 + $0xd0] sm:$0xff]
        %v342 = vld [vmem:[#allocation5 + $0xd8] sm:$0xff]
        %v343 = vld [vmem:[#allocation5 + $0xe0] sm:$0xff]
        %v344 = vld [vmem:[#allocation5 + $0xe8] sm:$0xff]
        %v345 = vld [vmem:[#allocation5 + $0xf0] sm:$0xff]
        %v346 = vld [vmem:[#allocation5 + $0xf8] sm:$0xff]
        %v347 = vld [vmem:[#allocation5 + $0x100] sm:$0xff]
        %v348 = vld [vmem:[#allocation5 + $0x108] sm:$0xff]
        %v349 = vld [vmem:[#allocation5 + $0x110] sm:$0xff]
        %v350 = vld [vmem:[#allocation5 + $0x118] sm:$0xff]
        %v351 = vld [vmem:[#allocation5 + $0x120] sm:$0xff]
        %v352 = vld [vmem:[#allocation5 + $0x128] sm:$0xff]
        %v353 = vld [vmem:[#allocation5 + $0x130] sm:$0xff]
        %v354 = vld [vmem:[#allocation5 + $0x138] sm:$0xff]
        %v355 = vld [vmem:[#allocation5 + $0x140] sm:$0xff]
        %v356 = vld [vmem:[#allocation5 + $0x148] sm:$0xff]
        %v357 = vld [vmem:[#allocation5 + $0x150] sm:$0xff]
        %v358 = vld [vmem:[#allocation5 + $0x158] sm:$0xff]
        %v359 = vld [vmem:[#allocation5 + $0x160] sm:$0xff]
        %v360 = vld [vmem:[#allocation5 + $0x168] sm:$0xff]
        %v361 = vld [vmem:[#allocation5 + $0x170] sm:$0xff]
        %v362 = vld [vmem:[#allocation5 + $0x178] sm:$0xff]
        %v363 = vld [vmem:[#allocation7] sm:$0x7]
        %v365 = vperm.slane %v363, 0
        %v366 = vperm.slane %v363, 1
        %v367 = vperm.slane %v363, 2
        %371 = vmatpush.msra.mxu0 %v360
        %372 = vmatpush.msra.mxu0 %v357
        %373 = vmatpush.msra.mxu0 %v354
        %374 = vmatpush.msra.mxu0 %v351
        %375 = vmatpush.msra.mxu0 %v348
        %376 = vmatpush.msra.mxu0 %v345
        %377 = vmatpush.msra.mxu0 %v342
        %378 = vmatpush.msra.mxu0 %v339
        %379 = vmatpush.msra.mxu0 %v336
        %380 = vmatpush.msra.mxu0 %v333
        %381 = vmatpush.msra.mxu0 %v330
        %382 = vmatpush.msra.mxu0 %v327
        %383 = vmatpush.msra.mxu0 %v324
        %384 = vmatpush.msra.mxu0 %v321
        %385 = vmatpush.msra.mxu0 %v318
        %386 = vmatpush.msra.mxu0 %v315
        %387 = vmatmul.f32.gmra.mxu0 %v283
        %v388 = vpop.f32.mrf.mxu0
        %v389 = vadd.f32 %v365, %v388
        %390 = vmatmul.f32.gmra.mxu0 %v284
        %v391 = vpop.f32.mrf.mxu0
        %v392 = vadd.f32 %v365, %v391
        %393 = vmatmul.f32.gmra.mxu0 %v285
        %v394 = vpop.f32.mrf.mxu0
        %v395 = vadd.f32 %v365, %v394
        %396 = vmatmul.f32.gmra.mxu0 %v286
        %v397 = vpop.f32.mrf.mxu0
        %v398 = vadd.f32 %v365, %v397
        %399 = vmatmul.f32.gmra.mxu0 %v287
        %v400 = vpop.f32.mrf.mxu0
        %v401 = vadd.f32 %v365, %v400
        %402 = vmatmul.f32.gmra.mxu0 %v288
        %v403 = vpop.f32.mrf.mxu0
        %v404 = vadd.f32 %v365, %v403
        %405 = vmatmul.f32.gmra.mxu0 %v289
        %v406 = vpop.f32.mrf.mxu0
        %v407 = vadd.f32 %v365, %v406
        %408 = vmatmul.f32.gmra.mxu0 %v290
        %v409 = vpop.f32.mrf.mxu0
        %v410 = vadd.f32 %v365, %v409
        %411 = vmatmul.f32.gmra.mxu0 %v291
        %v412 = vpop.f32.mrf.mxu0
        %v413 = vadd.f32 %v365, %v412
        %414 = vmatmul.f32.gmra.mxu0 %v292
        %v415 = vpop.f32.mrf.mxu0
        %v416 = vadd.f32 %v365, %v415
        %417 = vmatmul.f32.gmra.mxu0 %v293
        %v418 = vpop.f32.mrf.mxu0
        %v419 = vadd.f32 %v365, %v418
        %420 = vmatmul.f32.gmra.mxu0 %v294
        %v421 = vpop.f32.mrf.mxu0
        %v422 = vadd.f32 %v365, %v421
        %423 = vmatmul.f32.gmra.mxu0 %v295
        %v424 = vpop.f32.mrf.mxu0
        %v425 = vadd.f32 %v365, %v424
        %426 = vmatmul.f32.gmra.mxu0 %v296
        %v427 = vpop.f32.mrf.mxu0
        %v428 = vadd.f32 %v365, %v427
        %429 = vmatmul.f32.gmra.mxu0 %v297
        %v430 = vpop.f32.mrf.mxu0
        %v431 = vadd.f32 %v365, %v430
        %432 = vmatmul.f32.gmra.mxu0 %v298
        %v433 = vpop.f32.mrf.mxu0
        %v434 = vadd.f32 %v365, %v433
        %435 = vmatmul.f32.gmra.mxu0 %v299
        %v436 = vpop.f32.mrf.mxu0
        %v437 = vadd.f32 %v365, %v436
        %438 = vmatmul.f32.gmra.mxu0 %v300
        %v439 = vpop.f32.mrf.mxu0
        %v440 = vadd.f32 %v365, %v439
        %441 = vmatmul.f32.gmra.mxu0 %v301
        %v442 = vpop.f32.mrf.mxu0
        %v443 = vadd.f32 %v365, %v442
        %444 = vmatmul.f32.gmra.mxu0 %v302
        %v445 = vpop.f32.mrf.mxu0
        %v446 = vadd.f32 %v365, %v445
        %447 = vmatmul.f32.gmra.mxu0 %v303
        %v448 = vpop.f32.mrf.mxu0
        %v449 = vadd.f32 %v365, %v448
        %450 = vmatmul.f32.gmra.mxu0 %v304
        %v451 = vpop.f32.mrf.mxu0
        %v452 = vadd.f32 %v365, %v451
        %453 = vmatmul.f32.gmra.mxu0 %v305
        %v454 = vpop.f32.mrf.mxu0
        %v455 = vadd.f32 %v365, %v454
        %456 = vmatmul.f32.gmra.mxu0 %v306
        %v457 = vpop.f32.mrf.mxu0
        %v458 = vadd.f32 %v365, %v457
        %459 = vmatmul.f32.gmra.mxu0 %v307
        %v460 = vpop.f32.mrf.mxu0
        %v461 = vadd.f32 %v365, %v460
        %462 = vmatmul.f32.gmra.mxu0 %v308
        %v463 = vpop.f32.mrf.mxu0
        %v464 = vadd.f32 %v365, %v463
        %465 = vmatmul.f32.gmra.mxu0 %v309
        %v466 = vpop.f32.mrf.mxu0
        %v467 = vadd.f32 %v365, %v466
        %468 = vmatmul.f32.gmra.mxu0 %v310
        %v469 = vpop.f32.mrf.mxu0
        %v470 = vadd.f32 %v365, %v469
        %471 = vmatmul.f32.gmra.mxu0 %v311
        %v472 = vpop.f32.mrf.mxu0
        %v473 = vadd.f32 %v365, %v472
        %474 = vmatmul.f32.gmra.mxu0 %v312
        %v475 = vpop.f32.mrf.mxu0
        %v476 = vadd.f32 %v365, %v475
        %477 = vmatmul.f32.gmra.mxu0 %v313
        %v478 = vpop.f32.mrf.mxu0
        %v479 = vadd.f32 %v365, %v478
        %480 = vmatmul.f32.gmra.mxu0 %v314
        %v481 = vpop.f32.mrf.mxu0
        %v482 = vadd.f32 %v365, %v481
        %483 = vdwg.mxu0
        %484 = vmatpush.msra.mxu0 %v361
        %485 = vmatpush.msra.mxu0 %v358
        %486 = vmatpush.msra.mxu0 %v355
        %487 = vmatpush.msra.mxu0 %v352
        %488 = vmatpush.msra.mxu0 %v349
        %489 = vmatpush.msra.mxu0 %v346
        %490 = vmatpush.msra.mxu0 %v343
        %491 = vmatpush.msra.mxu0 %v340
        %492 = vmatpush.msra.mxu0 %v337
        %493 = vmatpush.msra.mxu0 %v334
        %494 = vmatpush.msra.mxu0 %v331
        %495 = vmatpush.msra.mxu0 %v328
        %496 = vmatpush.msra.mxu0 %v325
        %497 = vmatpush.msra.mxu0 %v322
        %498 = vmatpush.msra.mxu0 %v319
        %499 = vmatpush.msra.mxu0 %v316
        %500 = vmatmul.f32.gmra.mxu0 %v283
        %v501 = vpop.f32.mrf.mxu0
        %v502 = vadd.f32 %v366, %v501
        %503 = vmatmul.f32.gmra.mxu0 %v284
        %v504 = vpop.f32.mrf.mxu0
        %v505 = vadd.f32 %v366, %v504
        %506 = vmatmul.f32.gmra.mxu0 %v285
        %v507 = vpop.f32.mrf.mxu0
        %v508 = vadd.f32 %v366, %v507
        %509 = vmatmul.f32.gmra.mxu0 %v286
        %v510 = vpop.f32.mrf.mxu0
        %v511 = vadd.f32 %v366, %v510
        %512 = vmatmul.f32.gmra.mxu0 %v287
        %v513 = vpop.f32.mrf.mxu0
        %v514 = vadd.f32 %v366, %v513
        %515 = vmatmul.f32.gmra.mxu0 %v288
        %v516 = vpop.f32.mrf.mxu0
        %v517 = vadd.f32 %v366, %v516
        %518 = vmatmul.f32.gmra.mxu0 %v289
        %v519 = vpop.f32.mrf.mxu0
        %v520 = vadd.f32 %v366, %v519
        %521 = vmatmul.f32.gmra.mxu0 %v290
        %v522 = vpop.f32.mrf.mxu0
        %v523 = vadd.f32 %v366, %v522
        %524 = vmatmul.f32.gmra.mxu0 %v291
        %v525 = vpop.f32.mrf.mxu0
        %v526 = vadd.f32 %v366, %v525
        %527 = vmatmul.f32.gmra.mxu0 %v292
        %v528 = vpop.f32.mrf.mxu0
        %v529 = vadd.f32 %v366, %v528
        %530 = vmatmul.f32.gmra.mxu0 %v293
        %v531 = vpop.f32.mrf.mxu0
        %v532 = vadd.f32 %v366, %v531
        %533 = vmatmul.f32.gmra.mxu0 %v294
        %v534 = vpop.f32.mrf.mxu0
        %v535 = vadd.f32 %v366, %v534
        %536 = vmatmul.f32.gmra.mxu0 %v295
        %v537 = vpop.f32.mrf.mxu0
        %v538 = vadd.f32 %v366, %v537
        %539 = vmatmul.f32.gmra.mxu0 %v296
        %v540 = vpop.f32.mrf.mxu0
        %v541 = vadd.f32 %v366, %v540
        %542 = vmatmul.f32.gmra.mxu0 %v297
        %v543 = vpop.f32.mrf.mxu0
        %v544 = vadd.f32 %v366, %v543
        %545 = vmatmul.f32.gmra.mxu0 %v298
        %v546 = vpop.f32.mrf.mxu0
        %v547 = vadd.f32 %v366, %v546
        %548 = vmatmul.f32.gmra.mxu0 %v299
        %v549 = vpop.f32.mrf.mxu0
        %v550 = vadd.f32 %v366, %v549
        %551 = vmatmul.f32.gmra.mxu0 %v300
        %v552 = vpop.f32.mrf.mxu0
        %v553 = vadd.f32 %v366, %v552
        %554 = vmatmul.f32.gmra.mxu0 %v301
        %v555 = vpop.f32.mrf.mxu0
        %v556 = vadd.f32 %v366, %v555
        %557 = vmatmul.f32.gmra.mxu0 %v302
        %v558 = vpop.f32.mrf.mxu0
        %v559 = vadd.f32 %v366, %v558
        %560 = vmatmul.f32.gmra.mxu0 %v303
        %v561 = vpop.f32.mrf.mxu0
        %v562 = vadd.f32 %v366, %v561
        %563 = vmatmul.f32.gmra.mxu0 %v304
        %v564 = vpop.f32.mrf.mxu0
        %v565 = vadd.f32 %v366, %v564
        %566 = vmatmul.f32.gmra.mxu0 %v305
        %v567 = vpop.f32.mrf.mxu0
        %v568 = vadd.f32 %v366, %v567
        %569 = vmatmul.f32.gmra.mxu0 %v306
        %v570 = vpop.f32.mrf.mxu0
        %v571 = vadd.f32 %v366, %v570
        %572 = vmatmul.f32.gmra.mxu0 %v307
        %v573 = vpop.f32.mrf.mxu0
        %v574 = vadd.f32 %v366, %v573
        %575 = vmatmul.f32.gmra.mxu0 %v308
        %v576 = vpop.f32.mrf.mxu0
        %v577 = vadd.f32 %v366, %v576
        %578 = vmatmul.f32.gmra.mxu0 %v309
        %v579 = vpop.f32.mrf.mxu0
        %v580 = vadd.f32 %v366, %v579
        %581 = vmatmul.f32.gmra.mxu0 %v310
        %v582 = vpop.f32.mrf.mxu0
        %v583 = vadd.f32 %v366, %v582
        %584 = vmatmul.f32.gmra.mxu0 %v311
        %v585 = vpop.f32.mrf.mxu0
        %v586 = vadd.f32 %v366, %v585
        %587 = vmatmul.f32.gmra.mxu0 %v312
        %v588 = vpop.f32.mrf.mxu0
        %v589 = vadd.f32 %v366, %v588
        %590 = vmatmul.f32.gmra.mxu0 %v313
        %v591 = vpop.f32.mrf.mxu0
        %v592 = vadd.f32 %v366, %v591
        %593 = vmatmul.f32.gmra.mxu0 %v314
        %v594 = vpop.f32.mrf.mxu0
        %v595 = vadd.f32 %v366, %v594
        %596 = vdwg.mxu0
        %597 = vmatpush.msra.mxu0 %v362
        %598 = vmatpush.msra.mxu0 %v359
        %599 = vmatpush.msra.mxu0 %v356
        %600 = vmatpush.msra.mxu0 %v353
        %601 = vmatpush.msra.mxu0 %v350
        %602 = vmatpush.msra.mxu0 %v347
        %603 = vmatpush.msra.mxu0 %v344
        %604 = vmatpush.msra.mxu0 %v341
        %605 = vmatpush.msra.mxu0 %v338
        %606 = vmatpush.msra.mxu0 %v335
        %607 = vmatpush.msra.mxu0 %v332
        %608 = vmatpush.msra.mxu0 %v329
        %609 = vmatpush.msra.mxu0 %v326
        %610 = vmatpush.msra.mxu0 %v323
        %611 = vmatpush.msra.mxu0 %v320
        %612 = vmatpush.msra.mxu0 %v317
        %613 = vmatmul.f32.gmra.mxu0 %v283
        %v614 = vpop.f32.mrf.mxu0
        %v615 = vadd.f32 %v367, %v614
        %616 = vmatmul.f32.gmra.mxu0 %v284
        %v617 = vpop.f32.mrf.mxu0
        %v618 = vadd.f32 %v367, %v617
        %619 = vmatmul.f32.gmra.mxu0 %v285
        %v620 = vpop.f32.mrf.mxu0
        %v621 = vadd.f32 %v367, %v620
        %622 = vmatmul.f32.gmra.mxu0 %v286
        %v623 = vpop.f32.mrf.mxu0
        %v624 = vadd.f32 %v367, %v623
        %625 = vmatmul.f32.gmra.mxu0 %v287
        %v626 = vpop.f32.mrf.mxu0
        %v627 = vadd.f32 %v367, %v626
        %628 = vmatmul.f32.gmra.mxu0 %v288
        %v629 = vpop.f32.mrf.mxu0
        %v630 = vadd.f32 %v367, %v629
        %631 = vmatmul.f32.gmra.mxu0 %v289
        %v632 = vpop.f32.mrf.mxu0
        %v633 = vadd.f32 %v367, %v632
        %634 = vmatmul.f32.gmra.mxu0 %v290
        %v635 = vpop.f32.mrf.mxu0
        %v636 = vadd.f32 %v367, %v635
        %637 = vmatmul.f32.gmra.mxu0 %v291
        %v638 = vpop.f32.mrf.mxu0
        %v639 = vadd.f32 %v367, %v638
        %640 = vmatmul.f32.gmra.mxu0 %v292
        %v641 = vpop.f32.mrf.mxu0
        %v642 = vadd.f32 %v367, %v641
        %643 = vmatmul.f32.gmra.mxu0 %v293
        %v644 = vpop.f32.mrf.mxu0
        %v645 = vadd.f32 %v367, %v644
        %646 = vmatmul.f32.gmra.mxu0 %v294
        %v647 = vpop.f32.mrf.mxu0
        %v648 = vadd.f32 %v367, %v647
        %649 = vmatmul.f32.gmra.mxu0 %v295
        %v650 = vpop.f32.mrf.mxu0
        %v651 = vadd.f32 %v367, %v650
        %652 = vmatmul.f32.gmra.mxu0 %v296
        %v653 = vpop.f32.mrf.mxu0
        %v654 = vadd.f32 %v367, %v653
        %655 = vmatmul.f32.gmra.mxu0 %v297
        %v656 = vpop.f32.mrf.mxu0
        %v657 = vadd.f32 %v367, %v656
        %658 = vmatmul.f32.gmra.mxu0 %v298
        %v659 = vpop.f32.mrf.mxu0
        %v660 = vadd.f32 %v367, %v659
        %661 = vmatmul.f32.gmra.mxu0 %v299
        %v662 = vpop.f32.mrf.mxu0
        %v663 = vadd.f32 %v367, %v662
        %664 = vmatmul.f32.gmra.mxu0 %v300
        %v665 = vpop.f32.mrf.mxu0
        %v666 = vadd.f32 %v367, %v665
        %667 = vmatmul.f32.gmra.mxu0 %v301
        %v668 = vpop.f32.mrf.mxu0
        %v669 = vadd.f32 %v367, %v668
        %670 = vmatmul.f32.gmra.mxu0 %v302
        %v671 = vpop.f32.mrf.mxu0
        %v672 = vadd.f32 %v367, %v671
        %673 = vmatmul.f32.gmra.mxu0 %v303
        %v674 = vpop.f32.mrf.mxu0
        %v675 = vadd.f32 %v367, %v674
        %676 = vmatmul.f32.gmra.mxu0 %v304
        %v677 = vpop.f32.mrf.mxu0
        %v678 = vadd.f32 %v367, %v677
        %679 = vmatmul.f32.gmra.mxu0 %v305
        %v680 = vpop.f32.mrf.mxu0
        %v681 = vadd.f32 %v367, %v680
        %682 = vmatmul.f32.gmra.mxu0 %v306
        %v683 = vpop.f32.mrf.mxu0
        %v684 = vadd.f32 %v367, %v683
        %685 = vmatmul.f32.gmra.mxu0 %v307
        %v686 = vpop.f32.mrf.mxu0
        %v687 = vadd.f32 %v367, %v686
        %688 = vmatmul.f32.gmra.mxu0 %v308
        %v689 = vpop.f32.mrf.mxu0
        %v690 = vadd.f32 %v367, %v689
        %691 = vmatmul.f32.gmra.mxu0 %v309
        %v692 = vpop.f32.mrf.mxu0
        %v693 = vadd.f32 %v367, %v692
        %694 = vmatmul.f32.gmra.mxu0 %v310
        %v695 = vpop.f32.mrf.mxu0
        %v696 = vadd.f32 %v367, %v695
        %697 = vmatmul.f32.gmra.mxu0 %v311
        %v698 = vpop.f32.mrf.mxu0
        %v699 = vadd.f32 %v367, %v698
        %700 = vmatmul.f32.gmra.mxu0 %v312
        %v701 = vpop.f32.mrf.mxu0
        %v702 = vadd.f32 %v367, %v701
        %703 = vmatmul.f32.gmra.mxu0 %v313
        %v704 = vpop.f32.mrf.mxu0
        %v705 = vadd.f32 %v367, %v704
        %706 = vmatmul.f32.gmra.mxu0 %v314
        %v707 = vpop.f32.mrf.mxu0
        %v708 = vadd.f32 %v367, %v707
        %709 = vdwg.mxu0
        %710 = vst [vmem:[%s272] sm:$0xff] %v389
        %711 = vst [vmem:[%s272 + $0x8] sm:$0xff] %v392
        %712 = vst [vmem:[%s272 + $0x10] sm:$0xff] %v395
        %713 = vst [vmem:[%s272 + $0x18] sm:$0xff] %v398
        %714 = vst [vmem:[%s272 + $0x20] sm:$0xff] %v401
        %715 = vst [vmem:[%s272 + $0x28] sm:$0xff] %v404
        %716 = vst [vmem:[%s272 + $0x30] sm:$0xff] %v407
        %717 = vst [vmem:[%s272 + $0x38] sm:$0xff] %v410
        %718 = vst [vmem:[%s272 + $0x40] sm:$0xff] %v413
        %719 = vst [vmem:[%s272 + $0x48] sm:$0xff] %v416
        %720 = vst [vmem:[%s272 + $0x50] sm:$0xff] %v419
        %721 = vst [vmem:[%s272 + $0x58] sm:$0xff] %v422
        %722 = vst [vmem:[%s272 + $0x60] sm:$0xff] %v425
        %723 = vst [vmem:[%s272 + $0x68] sm:$0xff] %v428
        %724 = vst [vmem:[%s272 + $0x70] sm:$0xff] %v431
        %725 = vst [vmem:[%s272 + $0x78] sm:$0xff] %v434
        %726 = vst [vmem:[%s272 + $0x80] sm:$0xff] %v437
        %727 = vst [vmem:[%s272 + $0x88] sm:$0xff] %v440
        %728 = vst [vmem:[%s272 + $0x90] sm:$0xff] %v443
        %729 = vst [vmem:[%s272 + $0x98] sm:$0xff] %v446
        %730 = vst [vmem:[%s272 + $0xa0] sm:$0xff] %v449
        %731 = vst [vmem:[%s272 + $0xa8] sm:$0xff] %v452
        %732 = vst [vmem:[%s272 + $0xb0] sm:$0xff] %v455
        %733 = vst [vmem:[%s272 + $0xb8] sm:$0xff] %v458
        %734 = vst [vmem:[%s272 + $0xc0] sm:$0xff] %v461
        %735 = vst [vmem:[%s272 + $0xc8] sm:$0xff] %v464
        %736 = vst [vmem:[%s272 + $0xd0] sm:$0xff] %v467
        %737 = vst [vmem:[%s272 + $0xd8] sm:$0xff] %v470
        %738 = vst [vmem:[%s272 + $0xe0] sm:$0xff] %v473
        %739 = vst [vmem:[%s272 + $0xe8] sm:$0xff] %v476
        %740 = vst [vmem:[%s272 + $0xf0] sm:$0xff] %v479
        %741 = vst [vmem:[%s272 + $0xf8] sm:$0xff] %v482
        %742 = vst [vmem:[%s279] sm:$0xff] %v502
        %743 = vst [vmem:[%s279 + $0x8] sm:$0xff] %v615
        %744 = vst [vmem:[%s279 + $0x10] sm:$0xff] %v505
        %745 = vst [vmem:[%s279 + $0x18] sm:$0xff] %v618
        %746 = vst [vmem:[%s279 + $0x20] sm:$0xff] %v508
        %747 = vst [vmem:[%s279 + $0x28] sm:$0xff] %v621
        %748 = vst [vmem:[%s279 + $0x30] sm:$0xff] %v511
        %749 = vst [vmem:[%s279 + $0x38] sm:$0xff] %v624
        %750 = vst [vmem:[%s279 + $0x40] sm:$0xff] %v514
        %751 = vst [vmem:[%s279 + $0x48] sm:$0xff] %v627
        %752 = vst [vmem:[%s279 + $0x50] sm:$0xff] %v517
        %753 = vst [vmem:[%s279 + $0x58] sm:$0xff] %v630
        %754 = vst [vmem:[%s279 + $0x60] sm:$0xff] %v520
        %755 = vst [vmem:[%s279 + $0x68] sm:$0xff] %v633
        %756 = vst [vmem:[%s279 + $0x70] sm:$0xff] %v523
        %757 = vst [vmem:[%s279 + $0x78] sm:$0xff] %v636
        %758 = vst [vmem:[%s279 + $0x80] sm:$0xff] %v526
        %759 = vst [vmem:[%s279 + $0x88] sm:$0xff] %v639
        %760 = vst [vmem:[%s279 + $0x90] sm:$0xff] %v529
        %761 = vst [vmem:[%s279 + $0x98] sm:$0xff] %v642
        %762 = vst [vmem:[%s279 + $0xa0] sm:$0xff] %v532
        %763 = vst [vmem:[%s279 + $0xa8] sm:$0xff] %v645
        %764 = vst [vmem:[%s279 + $0xb0] sm:$0xff] %v535
        %765 = vst [vmem:[%s279 + $0xb8] sm:$0xff] %v648
        %766 = vst [vmem:[%s279 + $0xc0] sm:$0xff] %v538
        %767 = vst [vmem:[%s279 + $0xc8] sm:$0xff] %v651
        %768 = vst [vmem:[%s279 + $0xd0] sm:$0xff] %v541
        %769 = vst [vmem:[%s279 + $0xd8] sm:$0xff] %v654
        %770 = vst [vmem:[%s279 + $0xe0] sm:$0xff] %v544
        %771 = vst [vmem:[%s279 + $0xe8] sm:$0xff] %v657
        %772 = vst [vmem:[%s279 + $0xf0] sm:$0xff] %v547
        %773 = vst [vmem:[%s279 + $0xf8] sm:$0xff] %v660
        %774 = vst [vmem:[%s279 + $0x100] sm:$0xff] %v550
        %775 = vst [vmem:[%s279 + $0x108] sm:$0xff] %v663
        %776 = vst [vmem:[%s279 + $0x110] sm:$0xff] %v553
        %777 = vst [vmem:[%s279 + $0x118] sm:$0xff] %v666
        %778 = vst [vmem:[%s279 + $0x120] sm:$0xff] %v556
        %779 = vst [vmem:[%s279 + $0x128] sm:$0xff] %v669
        %780 = vst [vmem:[%s279 + $0x130] sm:$0xff] %v559
        %781 = vst [vmem:[%s279 + $0x138] sm:$0xff] %v672
        %782 = vst [vmem:[%s279 + $0x140] sm:$0xff] %v562
        %783 = vst [vmem:[%s279 + $0x148] sm:$0xff] %v675
        %784 = vst [vmem:[%s279 + $0x150] sm:$0xff] %v565
        %785 = vst [vmem:[%s279 + $0x158] sm:$0xff] %v678
        %786 = vst [vmem:[%s279 + $0x160] sm:$0xff] %v568
        %787 = vst [vmem:[%s279 + $0x168] sm:$0xff] %v681
        %788 = vst [vmem:[%s279 + $0x170] sm:$0xff] %v571
        %789 = vst [vmem:[%s279 + $0x178] sm:$0xff] %v684
        %790 = vst [vmem:[%s279 + $0x180] sm:$0xff] %v574
        %791 = vst [vmem:[%s279 + $0x188] sm:$0xff] %v687
        %792 = vst [vmem:[%s279 + $0x190] sm:$0xff] %v577
        %793 = vst [vmem:[%s279 + $0x198] sm:$0xff] %v690
        %794 = vst [vmem:[%s279 + $0x1a0] sm:$0xff] %v580
        %795 = vst [vmem:[%s279 + $0x1a8] sm:$0xff] %v693
        %796 = vst [vmem:[%s279 + $0x1b0] sm:$0xff] %v583
        %797 = vst [vmem:[%s279 + $0x1b8] sm:$0xff] %v696
        %798 = vst [vmem:[%s279 + $0x1c0] sm:$0xff] %v586
        %799 = vst [vmem:[%s279 + $0x1c8] sm:$0xff] %v699
        %800 = vst [vmem:[%s279 + $0x1d0] sm:$0xff] %v589
        %801 = vst [vmem:[%s279 + $0x1d8] sm:$0xff] %v702
        %802 = vst [vmem:[%s279 + $0x1e0] sm:$0xff] %v592
        %803 = vst [vmem:[%s279 + $0x1e8] sm:$0xff] %v705
        %804 = vst [vmem:[%s279 + $0x1f0] sm:$0xff] %v595
        %805 = vst [vmem:[%s279 + $0x1f8] sm:$0xff] %v708
        %s806 = sand.u32 %s118, 1
        %s807 = scalar_lea.sflag [#allocation4], %s806
        %s808 = sand.u32 %s118, 1
        %s809 = smul.addr %s808, 256
        %s810 = scalar_lea.vmem [#allocation8], %s809
        %s811 = sand.u32 %s146, 1
        %s812 = scalar_lea.sflag [#allocation10], %s811
        %s813 = sand.u32 %s146, 1
        %s814 = smul.addr %s813, 512
        %s815 = scalar_lea.vmem [#allocation9], %s814
        // Predicated region
        $region45: #{tpu_custom_call.1} parent=31 // pred_check
          %p816 = pneg %p128
        $region46: #{tpu_custom_call.1} parent=31 // pred_check_branch
          %818 = sbr.rel (%p816) target = $region48
        $region47: #{tpu_custom_call.1} parent=31 // pred_region
          %s819 = smul.u32 32, %s31
          %821 = vsyncadd %s807, 0
          %s822 = smul.addr %s30, 128
          %s823 = sadd.s32 %s819, %s822
          %s824 = smul.addr %s823, 8
          %s825 = scalar_lea.hbm %s3, %s824
          %s826 = sshll.u32 %s810, 4
          %s827 = int_to_ptr.vmem [resolvable:$true] %s826
          %s828 = sshll.u32 %s825, 4
          %s829 = int_to_ptr.hbm [resolvable:$true] %s828
          %834 = dma.vmem_to_hbm [thread:$0]  %s827, 4096, %s829, %s807, 128, 128, 8
        $region48: #{tpu_custom_call.1} parent=31 // pred_fallthru
          _
        // Predicated region
        $region49: #{tpu_custom_call.1} parent=31 // pred_check
          %p835 = pneg %p156
        $region50: #{tpu_custom_call.1} parent=31 // pred_check_branch
          %837 = sbr.rel (%p835) target = $region52
        $region51: #{tpu_custom_call.1} parent=31 // pred_region
          %s838 = smul.u32 32, %s31
          %840 = vsyncadd %s812, 0
          %s841 = smul.addr %s838, 2
          %s842 = smul.addr %s30, 256
          %s843 = sadd.s32 %s841, %s842
          %s844 = smul.addr %s843, 8
          %s845 = scalar_lea.hbm %s4, %s844
          %s846 = sshll.u32 %s815, 4
          %s847 = int_to_ptr.vmem [resolvable:$true] %s846
          %s848 = sshll.u32 %s845, 4
          %s849 = int_to_ptr.hbm [resolvable:$true] %s848
          %854 = dma.vmem_to_hbm [thread:$0]  %s847, 8192, %s849, %s812, 256, 256, 16
        $region52: #{tpu_custom_call.1} parent=31 // pred_fallthru
          _
      $region32: #{tpu_custom_call.1} parent=5 // pred_fallthru
        _
      %p855 = scmp.le.s32.totalorder 2, %s21
      // Predicated region
      $region53: #{tpu_custom_call.1} parent=5 // pred_check
        %p856 = pneg %p855
      $region54: #{tpu_custom_call.1} parent=5 // pred_check_branch
        %858 = sbr.rel (%p856) target = $region56
      $region55: #{tpu_custom_call.1} parent=5 // pred_region
        %s859 = ssub.s32 %s21, 2
        // Predicated region
        $region57: #{tpu_custom_call.1} parent=55 // pred_check
          %p860 = pneg %p134
        $region58: #{tpu_custom_call.1} parent=55 // pred_check_branch
          %862 = sbr.rel (%p860) target = $region60
        $region59: #{tpu_custom_call.1} parent=55 // pred_region
          %s863 = sand.u32 %s119, 1
          %s864 = scalar_lea.sflag [#allocation4], %s863
          %s865 = sand.u32 %s119, 1
          %s866 = smul.addr %s865, 256
          %s867 = scalar_lea.vmem [#allocation8], %s866
          %869 = dma.done %s864, 4096
        $region60: #{tpu_custom_call.1} parent=55 // pred_fallthru
          _
        // Predicated region
        $region61: #{tpu_custom_call.1} parent=55 // pred_check
          %p870 = pneg %p162
        $region62: #{tpu_custom_call.1} parent=55 // pred_check_branch
          %872 = sbr.rel (%p870) target = $region64
        $region63: #{tpu_custom_call.1} parent=55 // pred_region
          %s873 = sand.u32 %s147, 1
          %s874 = scalar_lea.sflag [#allocation10], %s873
          %s875 = sand.u32 %s147, 1
          %s876 = smul.addr %s875, 512
          %s877 = scalar_lea.vmem [#allocation9], %s876
          %879 = dma.done %s874, 8192
        $region64: #{tpu_custom_call.1} parent=55 // pred_fallthru
          _
      $region56: #{tpu_custom_call.1} parent=5 // pred_fallthru
        _
    $region6: #{tpu_custom_call.1} parent=1 // loop_footer
      %s25 = sadd.s32 1, %s21
    $region7: #{tpu_custom_call.1} parent=1 // loop_footer_branch
      %20 = sbr.rel target = $region3
    $region8: #{tpu_custom_call.1} parent=1 // loop_exit
      _
    %880 = vsyncpa [#allocation3], 1
    %s881 = scalar_lea.sflag [#allocation3], 1
    %882 = vsyncpa %s881, 1
    %883 = vsyncpa [#allocation6], 1
    %884 = vsyncpa [#allocation4], 1
    %s885 = scalar_lea.sflag [#allocation4], 1
    %886 = vsyncpa %s885, 1
    %887 = vsyncpa [#allocation10], 1
    %s888 = scalar_lea.sflag [#allocation10], 1
    %889 = vsyncpa %s888, 1

</llo_original>
